<compile_context>
chip_gen: v5e
topology: v5e:2x2
jax: 0.10.0
libtpu: 0.0.40
codegen_flags: <defaults>
</compile_context>

<pallas_src>
import functools
import math

import jax
import jax.numpy as jnp
from jax.experimental import pallas as pl
from jax.experimental.pallas import tpu as pltpu


def _bessel_kernel(r_ref, o_ref, *, prefactor, pi_c, num_basis):
    """One grid step: r (1, T) lane-dense edges -> o (num_basis, T) slab."""
    r = r_ref[...]                                  # (1, T) f32

    # scale = prefactor / r : EUP approx reciprocal (sin/cos do not use the
    # EUP, so this slot is free) + one Newton-Raphson step for ~f32 accuracy.
    y0 = pl.reciprocal(r, approx=True)
    inv = y0 * (2.0 - r * y0)
    scale = prefactor * inv

    # sin(k * pi_c * r), k = 1..num_basis, via the Chebyshev recurrence.
    # Linear recurrence -> fold the per-edge scale into s_1 once.
    x = pi_c * r
    c2 = 2.0 * jnp.cos(x)
    t_prev = jnp.zeros_like(r)                      # scale * sin(0 * x)
    t_cur = scale * jnp.sin(x)                      # scale * sin(1 * x)
    rows = [t_cur]
    for _ in range(num_basis - 1):
        t_next = c2 * t_cur - t_prev
        rows.append(t_next)
        t_prev, t_cur = t_cur, t_next
    o_ref[...] = jnp.concatenate(rows, axis=0).astype(o_ref.dtype)


def bessel_basis_pallas(r, cutoff_length, prefactor, num_basis=8, *,
                        tile_n=65536, edges_last=False):
    """r: (N,) f32 -> (N, num_basis) (torch layout) or (num_basis, N) slab."""
    n = r.shape[0]
    pi_c = math.pi / float(cutoff_length)

    # Pad only to a 128-lane multiple (pad value 1.0 keeps the divide finite);
    # any ragged last grid step is handled as a Pallas boundary block, so we
    # never pad / compute a full extra tile.
    n_pad = ((n + 127) // 128) * 128
    r = r.astype(jnp.float32)
    if n_pad != n:
        r = jnp.pad(r, (0, n_pad - n), constant_values=1.0)
    r_row = r.reshape(1, n_pad)                     # edges on the lane axis

    # Large tiles amortize per-step overhead; cap so large problems still get
    # >=2 grid steps (the "parallel" axis then uses both TensorCores on v7x).
    half = (((n_pad + 1) // 2) + 127) // 128 * 128
    tile_eff = max(128, min(int(tile_n), n_pad, half))
    grid = pl.cdiv(n_pad, tile_eff)

    kernel = functools.partial(
        _bessel_kernel, prefactor=float(prefactor), pi_c=pi_c,
        num_basis=int(num_basis))

    slab = pl.pallas_call(
        kernel,
        out_shape=jax.ShapeDtypeStruct((num_basis, n_pad), jnp.float32),
        grid_spec=pltpu.PrefetchScalarGridSpec(
            num_scalar_prefetch=0,
            grid=(grid,),
            in_specs=[pl.BlockSpec((1, tile_eff), lambda i: (0, i))],
            out_specs=pl.BlockSpec((num_basis, tile_eff), lambda i: (0, i)),
        ),
        compiler_params=pltpu.CompilerParams(
            dimension_semantics=("parallel",)),
    )(r_row)

    if edges_last:
        # Lane-dense slab: preferred layout for a downstream consumer that
        # contracts over num_basis (avoids an extra HBM pass).
        return slab[:, :n]
    # Torch-module layout (N, num_basis).  NOTE: this re-layout is a separate
    # XLA op; fuse it into the consumer (or use edges_last=True) if hot.
    return slab[:, :n].T


class BesselBasisJax:
    """Forward-only JAX/Pallas port of sevenn BesselBasis."""

    def __init__(self, cutoff_length: float, bessel_basis_num: int = 8,
                 normalize: str = "nequip"):
        self.cutoff_length = float(cutoff_length)
        self.num_basis = int(bessel_basis_num)
        normalize = normalize.lower()
        if normalize == "nequip":
            self.prefactor = 2.0 / self.cutoff_length
        elif normalize == "ortho":
            self.prefactor = (2.0 / self.cutoff_length) ** 0.5
        else:
            raise ValueError(f"Unknown Bessel basis normalize: {normalize}")
        pi_c = math.pi / self.cutoff_length
        # Trainable nn.Parameter in torch; the kernel's sin(kx) recurrence
        # bakes in this init value (coeffs == k*pi/cutoff).
        self.coeffs = jnp.asarray(
            [k * pi_c for k in range(1, self.num_basis + 1)], dtype=jnp.float32)

    def __call__(self, r, *, edges_last=False):
        return bessel_basis_pallas(r, self.cutoff_length, self.prefactor,
                                   self.num_basis, edges_last=edges_last)


if __name__ == "__main__":
    cutoff = 5.0
    num_basis = 8
    module = BesselBasisJax(cutoff_length=cutoff, bessel_basis_num=num_basis)

    def ref_fn(rr):
        ur = rr[:, None]
        return module.prefactor * jnp.sin(module.coeffs[None, :] * ur) / ur

    # Case 1: small, 128-multiple edge count (2 grid steps).
    N = 256
    r = jax.random.uniform(jax.random.PRNGKey(0), (N,), dtype=jnp.float32,
                           minval=0.1, maxval=cutoff)
    out = jax.block_until_ready(module(r))
    ref = ref_fn(r)
    assert out.shape == (N, num_basis)
    assert jnp.allclose(out, ref, atol=2e-5, rtol=2e-5)

    # Lane-dense slab path (fusion-friendly layout).
    slab = jax.block_until_ready(module(r, edges_last=True))
    assert slab.shape == (num_basis, N)
    assert jnp.allclose(slab, ref.T, atol=2e-5, rtol=2e-5)

    # Case 2: non-128-multiple edge count -> exercises the 128-pad and the
    # ragged (boundary-block) last grid step.
    N2 = 300
    r2 = jax.random.uniform(jax.random.PRNGKey(1), (N2,), dtype=jnp.float32,
                            minval=0.1, maxval=cutoff)
    out2 = jax.block_until_ready(module(r2))
    ref2 = ref_fn(r2)
    assert out2.shape == (N2, num_basis)
    assert jnp.allclose(out2, ref2, atol=2e-5, rtol=2e-5)

    print("KERNEL_OK")
</pallas_src>

<mosaic_0001>
module attributes {stable_mosaic.version = 11 : i64} {
  func.func @_bessel_kernel(%arg0: i32, %arg1: memref<1x128xf32, #tpu.memory_space<vmem>>, %arg2: memref<8x128xf32, #tpu.memory_space<vmem>>) attributes {dimension_semantics = [#tpu.dimension_semantics<parallel>], iteration_bounds = array<i64: 2>, scalar_prefetch = 0 : i64, scratch_operands = 0 : i64, tpu.core_type = #tpu.core_type<tc>, window_params = [{transform_indices = @transform_0, window_bounds = array<i64: 1, 128>}, {transform_indices = @transform_1, window_bounds = array<i64: 8, 128>}]} {
    %c0 = arith.constant 0 : index
    %c0_0 = arith.constant 0 : index
    %0 = vector.load %arg1[%c0, %c0_0] : memref<1x128xf32, #tpu.memory_space<vmem>>, vector<1x128xf32>
    %1 = tpu.reciprocal %0 {approx = true} : vector<1x128xf32> -> vector<1x128xf32>
    %2 = arith.mulf %0, %1 : vector<1x128xf32>
    %cst = arith.constant 2.000000e+00 : f32
    %3 = vector.broadcast %cst : f32 to vector<1x128xf32>
    %4 = arith.subf %3, %2 : vector<1x128xf32>
    %5 = arith.mulf %1, %4 : vector<1x128xf32>
    %cst_1 = arith.constant 4.000000e-01 : f32
    %6 = vector.broadcast %cst_1 : f32 to vector<1x128xf32>
    %7 = arith.mulf %6, %5 : vector<1x128xf32>
    %cst_2 = arith.constant 0.628318548 : f32
    %8 = vector.broadcast %cst_2 : f32 to vector<1x128xf32>
    %9 = arith.mulf %8, %0 : vector<1x128xf32>
    %10 = math.cos %9 : vector<1x128xf32>
    %cst_3 = arith.constant 2.000000e+00 : f32
    %11 = vector.broadcast %cst_3 : f32 to vector<1x128xf32>
    %12 = arith.mulf %11, %10 : vector<1x128xf32>
    %cst_4 = arith.constant 0.000000e+00 : f32
    %13 = vector.broadcast %cst_4 : f32 to vector<1x128xf32>
    %14 = math.sin %9 : vector<1x128xf32>
    %15 = arith.mulf %7, %14 : vector<1x128xf32>
    %16 = arith.mulf %12, %15 : vector<1x128xf32>
    %17 = arith.subf %16, %13 : vector<1x128xf32>
    %18 = arith.mulf %12, %17 : vector<1x128xf32>
    %19 = arith.subf %18, %15 : vector<1x128xf32>
    %20 = arith.mulf %12, %19 : vector<1x128xf32>
    %21 = arith.subf %20, %17 : vector<1x128xf32>
    %22 = arith.mulf %12, %21 : vector<1x128xf32>
    %23 = arith.subf %22, %19 : vector<1x128xf32>
    %24 = arith.mulf %12, %23 : vector<1x128xf32>
    %25 = arith.subf %24, %21 : vector<1x128xf32>
    %26 = arith.mulf %12, %25 : vector<1x128xf32>
    %27 = arith.subf %26, %23 : vector<1x128xf32>
    %28 = arith.mulf %12, %27 : vector<1x128xf32>
    %29 = arith.subf %28, %25 : vector<1x128xf32>
    %30 = tpu.concatenate %15, %17, %19, %21, %23, %25, %27, %29 in 0 : vector<1x128xf32>, vector<1x128xf32>, vector<1x128xf32>, vector<1x128xf32>, vector<1x128xf32>, vector<1x128xf32>, vector<1x128xf32>, vector<1x128xf32> -> vector<8x128xf32>
    %c0_5 = arith.constant 0 : index
    %c0_6 = arith.constant 0 : index
    %31 = vector.load %arg2[%c0_5, %c0_6] : memref<8x128xf32, #tpu.memory_space<vmem>>, vector<8x128xf32>
    tpu.vector_store %arg2[%c0_5, %c0_6], %30 {strides = array<i32>} : memref<8x128xf32, #tpu.memory_space<vmem>>, vector<8x128xf32>,
    return
  }
  func.func @transform_0(%arg0: i32) -> (i32, i32) {
    %c0_i32 = arith.constant 0 : i32
    %c0_i32_0 = arith.constant 0 : i32
    return %c0_i32, %arg0 : i32, i32
  }
  func.func @transform_1(%arg0: i32) -> (i32, i32) {
    %c0_i32 = arith.constant 0 : i32
    %c0_i32_0 = arith.constant 0 : i32
    return %c0_i32, %arg0 : i32, i32
  }
}

</mosaic_0001>

<llo_original>
// kernel: tpu_custom_call.1
$region0: #{tpu_custom_call.1}
  #allocation0 [shape = 'u32[]', space=smem, size = 0x4, offset = 0x4, fixed_abs, tag = 'smem constant byte address 0x4 - core index']
  #allocation1 [shape = 'u32[72,128]{1,0:T(1,128)}', space=vmem, size = 0x9000, scoped, tag = 'internal scratch']
  %s0 = inlined_call_operand.hbm [shape: f32[1,256], index: 0, kind: input, shape index: {}]
  %s1 = inlined_call_operand.hbm [shape: f32[8,256], index: 1, kind: output, shape index: {}]
  %s2 = sld [smem:[#allocation0]]
  $region41: #{tpu_custom_call.1} parent=0
    _
  %s4 = ssub.s32 1, %s2
  %s5 = scalar_select 0, %s4, %s2
  $region1: #{tpu_custom_call.1} parent=0
    #allocation2 [shape = 'u8[1024]{0}', space=vmem, size = 0x400, scoped, tag = 'input window, operand 0']
    #allocation3 [shape = 's32[2]{0}', space=sflag, size = 0x8, scoped, tag = 'scoped memory for tpu_custom_call.1']
    #allocation4 [shape = 's32[2]{0}', space=sflag, size = 0x8, scoped, tag = 'scoped memory for tpu_custom_call.1']
    #allocation5 [shape = 'u8[8192]{0}', space=vmem, size = 0x2000, scoped, tag = 'output window, operand 0']
    %6 = vsyncpa [#allocation3], 0
    %s7 = scalar_lea.sflag [#allocation3], 1
    %8 = vsyncpa %s7, 0
    %9 = vsyncpa [#allocation4], 0
    %s10 = scalar_lea.sflag [#allocation4], 1
    %11 = vsyncpa %s10, 0
    loop: start=0, step=1, limit=4
    $region2: #{tpu_custom_call.1} parent=1 // loop_pre_header
      _
    $region3: #{tpu_custom_call.1} parent=1 // loop_header
      %s13 = sphi 0, %s17
      %p14 = scmp.ge.s32.totalorder %s13, 4
      %s23 = sphi 0, %s25
      %s26 = sphi 0, %s23
      %s27 = sphi 0, %s26
      %s43 = sphi 0, %s27
      %s49 = sphi 0, %s51
      %s52 = sphi 0, %s49
      %s53 = sphi 0, %s52
      %s69 = sphi 0, %s53
    $region4: #{tpu_custom_call.1} parent=1 // loop_header_branch
      %16 = sbr.rel (%p14) target = $region8
    $region5: #{tpu_custom_call.1} parent=1 // loop_body
      %s18 = ssub.s32 %s13, 1
      %s19 = ssub.s32 %s13, 2
      %s20 = sadd.s32 %s13, 1
      %s21 = ssub.s32 %s13, %s20
      %p22 = scmp.eq.s32.totalorder %s21, 0
      %s24 = sadd.s32 %s23, 1
      %s25 = scalar_select %p22, %s23, %s24
      %p28 = pneg %p22
      %p29 = scmp.eq.s32.totalorder %s13, 1
      %p30 = por %p28, %p29
      %p31 = scmp.ne.s32.totalorder %s23, %s26
      %p32 = scmp.eq.s32.totalorder %s13, 0
      %p33 = por %p31, %p32
      %p34 = scmp.ne.s32.totalorder %s23, %s26
      %p35 = scmp.eq.s32.totalorder %s18, 1
      %p36 = por %p34, %p35
      %p37 = scmp.ne.s32.totalorder %s26, %s27
      %p38 = scmp.eq.s32.totalorder %s18, 0
      %p39 = por %p37, %p38
      %p40 = scmp.ne.s32.totalorder %s26, %s27
      %p41 = scmp.eq.s32.totalorder %s19, 1
      %p42 = por %p40, %p41
      %p44 = scmp.ne.s32.totalorder %s27, %s43
      %p45 = scmp.eq.s32.totalorder %s19, 0
      %p46 = por %p44, %p45
      %s47 = ssub.s32 %s13, %s20
      %p48 = scmp.eq.s32.totalorder %s47, 0
      %s50 = sadd.s32 %s49, 1
      %s51 = scalar_select %p48, %s49, %s50
      %p54 = pneg %p48
      %p55 = scmp.eq.s32.totalorder %s13, 1
      %p56 = por %p54, %p55
      %p57 = scmp.ne.s32.totalorder %s49, %s52
      %p58 = scmp.eq.s32.totalorder %s13, 0
      %p59 = por %p57, %p58
      %p60 = scmp.ne.s32.totalorder %s49, %s52
      %p61 = scmp.eq.s32.totalorder %s18, 1
      %p62 = por %p60, %p61
      %p63 = scmp.ne.s32.totalorder %s52, %s53
      %p64 = scmp.eq.s32.totalorder %s18, 0
      %p65 = por %p63, %p64
      %p66 = scmp.ne.s32.totalorder %s52, %s53
      %p67 = scmp.eq.s32.totalorder %s19, 1
      %p68 = por %p66, %p67
      %p70 = scmp.ne.s32.totalorder %s53, %s69
      %p71 = scmp.eq.s32.totalorder %s19, 0
      %p72 = por %p70, %p71
      %p73 = scmp.le.s32.totalorder 1, %s13
      %p74 = scmp.lt.s32.totalorder %s13, 3
      %p75 = pnand %p73, %p74
      %p76 = pneg %p75
      // Predicated region
      $region9: #{tpu_custom_call.1} parent=5 // pred_check
        _
      $region10: #{tpu_custom_call.1} parent=5 // pred_check_branch
        %78 = sbr.rel (%p75) target = $region12
      $region11: #{tpu_custom_call.1} parent=5 // pred_region
        %s79 = ssub.s32 %s13, 1
      $region12: #{tpu_custom_call.1} parent=5 // pred_fallthru
        _
      %p80 = scmp.lt.s32.totalorder %s13, 2
      // Predicated region
      $region13: #{tpu_custom_call.1} parent=5 // pred_check
        %p81 = pneg %p80
      $region14: #{tpu_custom_call.1} parent=5 // pred_check_branch
        %83 = sbr.rel (%p81) target = $region16
      $region15: #{tpu_custom_call.1} parent=5 // pred_region
        // Predicated region
        $region17: #{tpu_custom_call.1} parent=15 // pred_check
          %p84 = pneg %p33
        $region18: #{tpu_custom_call.1} parent=15 // pred_check_branch
          %86 = sbr.rel (%p84) target = $region20
        $region19: #{tpu_custom_call.1} parent=15 // pred_region
          %s87 = sand.u32 %s23, 1
          %s88 = scalar_lea.sflag [#allocation3], %s87
          %s89 = sand.u32 %s23, 1
          %s90 = scalar_lea.vmem [#allocation2], %s89
          %92 = vsyncadd %s88, 0
          %s93 = scalar_lea.hbm %s0, %s13
          %s95 = sshll.u32 %s93, 4
          %s96 = int_to_ptr.hbm [resolvable:$true] %s95
          %s97 = sshll.u32 %s90, 4
          %s98 = int_to_ptr.vmem [resolvable:$true] %s97
          %100 = dma.hbm_to_vmem [thread:$0]  %s96, 16, %s98, %s88
        $region20: #{tpu_custom_call.1} parent=15 // pred_fallthru
          _
      $region16: #{tpu_custom_call.1} parent=5 // pred_fallthru
        _
      %p101 = scmp.le.s32.totalorder 1, %s13
      %p102 = scmp.lt.s32.totalorder %s13, 3
      %p103 = pnand %p101, %p102
      %p104 = pneg %p103
      // Predicated region
      $region21: #{tpu_custom_call.1} parent=5 // pred_check
        _
      $region22: #{tpu_custom_call.1} parent=5 // pred_check_branch
        %106 = sbr.rel (%p103) target = $region24
      $region23: #{tpu_custom_call.1} parent=5 // pred_region
        %s107 = ssub.s32 %s13, 1
        %s108 = sand.u32 %s26, 1
        %s109 = scalar_lea.sflag [#allocation3], %s108
        %s110 = sand.u32 %s26, 1
        %s111 = scalar_lea.vmem [#allocation2], %s110
        // Predicated region
        $region25: #{tpu_custom_call.1} parent=23 // pred_check
          %p112 = pneg %p39
        $region26: #{tpu_custom_call.1} parent=23 // pred_check_branch
          %114 = sbr.rel (%p112) target = $region28
        $region27: #{tpu_custom_call.1} parent=23 // pred_region
          %116 = dma.done %s109, 16
        $region28: #{tpu_custom_call.1} parent=23 // pred_fallthru
          _
        %s117 = sand.u32 %s26, 1
        %s118 = scalar_lea.sflag [#allocation3], %s117
        %s119 = sand.u32 %s26, 1
        %s120 = scalar_lea.vmem [#allocation2], %s119
        %p121 = pneg %p39
        %p122 = pneg %p36
        %p123 = pneg %p65
        %p124 = pneg %p62
        %s125 = sand.u32 %s52, 1
        %s126 = scalar_lea.sflag [#allocation4], %s125
        %s127 = sand.u32 %s52, 1
        %s128 = smul.addr %s127, 8
        %s129 = scalar_lea.vmem [#allocation5], %s128
        %v130 = vld [vmem:[%s111] sm:$0x1]
        %v131 = vrcp.pop %v130
        %v132 = vmul.f32 %v130, %v131
        %v133 = vsub.f32 2.0, %v132
        %v134 = vmul.f32 %v131, %v133
        %v135 = vmul.f32 %v134, 0.4
        %v136 = vmul.f32 %v130, 0.62831855
        %v137 = vand.u32 2147483647, %v136
        %vm138 = vcmp.le.f32.partialorder %v137, 0.7853982
        %vm139 = vcmp.lt.s32.totalorder %v136, 0
        %v140 = vand.u32 %v136, 2139095040
        %v141 = vshrl.u32 %v140, 23
        %v142 = vsub.s32 %v141, 127
        %v143 = vand.u32 2147483647, %v136
        %v144 = vand.u32 %v143, 8388607
        %v145 = vor.u32 %v144, 8388608
        %v146 = vsub.s32 0, %v145
        %v147 = vadd.s32 %v142, 1
        %vm148 = vcmp.gt.s32.totalorder %v147, 0
        %v149 = vsel %vm148, %v147, 0
        %v150 = vshrl.u32 %v149, 5
        %v151 = vand.u32 %v149, 31
        %v152 = vsub.s32 32, %v151
        %v153 = vshrl.u32 683565275, %v152
        %v154 = vshll.u32 683565275, %v151
        %v155 = vshrl.u32 2475754826, %v152
        %v156 = vor.u32 %v154, %v155
        %v157 = vshll.u32 2475754826, %v151
        %v158 = vshrl.u32 2131351028, %v152
        %v159 = vor.u32 %v157, %v158
        %v160 = vshll.u32 2131351028, %v151
        %v161 = vshrl.u32 2102212464, %v152
        %v162 = vor.u32 %v160, %v161
        %v163 = vshll.u32 2102212464, %v151
        %v164 = vshrl.u32 920167782, %v152
        %v165 = vor.u32 %v163, %v164
        %v166 = vshll.u32 920167782, %v151
        %v167 = vshrl.u32 1326507024, %v152
        %v168 = vor.u32 %v166, %v167
        %vm169 = vcmp.lt.s32.totalorder %v150, 1
        %vm170 = vcmp.lt.s32.totalorder %v150, 2
        %vm171 = vcmp.lt.s32.totalorder %v150, 3
        %vm172 = vcmp.lt.s32.totalorder %v150, 4
        %v173 = vsel %vm169, %v153, %v156
        %v174 = vsel %vm172, %v162, 2102212464
        %v175 = vsel %vm171, %v159, %v174
        %v176 = vsel %vm170, %v173, %v175
        %v177 = vsel %vm169, %v156, %v159
        %v178 = vsel %vm172, %v165, 920167782
        %v179 = vsel %vm171, %v162, %v178
        %v180 = vsel %vm170, %v177, %v179
        %v181 = vsel %vm169, %v159, %v162
        %v182 = vsel %vm172, %v168, 1326507024
        %v183 = vsel %vm171, %v165, %v182
        %v184 = vsel %vm170, %v181, %v183
        %v185 = vshll.u32 %v145, 8
        %v186 = vand.u32 %v185, 65535
        %v187 = vshrl.u32 %v185, 16
        %v188 = vand.u32 %v184, 65535
        %v189 = vshrl.u32 %v184, 16
        %v190 = vmul.u32 %v186, %v188
        %v191 = vmul.u32 %v186, %v189
        %v192 = vmul.u32 %v187, %v188
        %v193 = vmul.u32 %v187, %v189
        %v194 = vshll.u32 %v191, 16
        %v195 = vshrl.u32 %v191, 16
        %v196 = vshll.u32 %v192, 16
        %v197 = vshrl.u32 %v192, 16
        %vm198 = vc.u32 %v190, %v194
        %v199 = vsel %vm198, 1, 0
        %v200 = vadd.s32 %v190, %v194
        %v201 = vadd.s32 %v193, %v199
        %vm202 = vc.u32 %v200, %v196
        %v203 = vsel %vm202, 1, 0
        %v204 = vadd.s32 %v200, %v196
        %v205 = vadd.s32 %v201, %v203
        %v206 = vadd.s32 %v205, %v195
        %v207 = vadd.s32 %v206, %v197
        %v208 = vand.u32 %v185, 65535
        %v209 = vshrl.u32 %v185, 16
        %v210 = vand.u32 %v180, 65535
        %v211 = vshrl.u32 %v180, 16
        %v212 = vmul.u32 %v208, %v210
        %v213 = vmul.u32 %v208, %v211
        %v214 = vmul.u32 %v209, %v210
        %v215 = vmul.u32 %v209, %v211
        %v216 = vshll.u32 %v213, 16
        %v217 = vshrl.u32 %v213, 16
        %v218 = vshll.u32 %v214, 16
        %v219 = vshrl.u32 %v214, 16
        %vm220 = vc.u32 %v212, %v216
        %v221 = vsel %vm220, 1, 0
        %v222 = vadd.s32 %v212, %v216
        %v223 = vadd.s32 %v215, %v221
        %vm224 = vc.u32 %v222, %v218
        %v225 = vsel %vm224, 1, 0
        %v226 = vadd.s32 %v222, %v218
        %v227 = vadd.s32 %v223, %v225
        %v228 = vadd.s32 %v227, %v217
        %v229 = vadd.s32 %v228, %v219
        %v230 = vmul.u32 %v185, %v176
        %v231 = vadd.s32 %v207, %v226
        %vm232 = vc.u32 %v207, %v226
        %v233 = vadd.s32 %v229, 1
        %v234 = vsel %vm232, %v233, %v229
        %v235 = vadd.s32 %v230, %v234
        %v236 = vadd.s32 %v235, 536870912
        %v237 = vshrl.u32 %v236, 30
        %v238 = vshll.u32 %v237, 30
        %v239 = vsub.s32 %v235, %v238
        %vm240 = vcmp.lt.s32.totalorder %v239, 0
        %v241 = vsub.s32 0, %v239
        %v242 = vsel %vm240, %v241, %v239
        %v243 = vclz %v242
        %v244 = vsub.s32 %v243, 2
        %vm245 = vcmp.gt.s32.totalorder 0, %v244
        %v246 = vsel %vm245, 0, %v244
        %v247 = vsub.s32 32, %v246
        %v248 = vshll.u32 %v239, %v246
        %v249 = vshrl.u32 %v231, %v247
        %v250 = vor.u32 %v248, %v249
        %v251 = vsub.s32 4294967266, %v246
        %v252 = vadd.s32 %v251, 127
        %v253 = vshll.u32 %v252, 23
        %v254 = vor.u32 4788187, %v253
        %v255 = vand.u32 2147483647, %v254
        %v257 = vcvt.s32.f32 %v250
        %v258 = vmul.f32 %v257, %v255
        %v259 = vxor.u32 %v258, 2147483648
        %v260 = vsel %vm139, %v259, %v258
        %v261 = vsub.s32 4, %v237
        %v262 = vsel %vm139, %v261, %v237
        %v263 = vsel %vm138, %v136, %v260
        %v264 = vsel %vm138, 0, %v262
        %v265 = vmul.f32 %v263, %v263
        %v266 = vmul.f32 %v265, -0.001358992
        %v267 = vadd.f32 %v266, 0.041655596
        %v268 = vmul.f32 %v265, %v267
        %v269 = vadd.f32 %v268, -0.4999988
        %v270 = vmul.f32 %v265, %v269
        %v271 = vadd.f32 1.0, %v270
        %v272 = vmul.f32 %v263, %v263
        %v273 = vmul.f32 %v272, -0.00019511016
        %v274 = vadd.f32 %v273, 0.008332121
        %v275 = vmul.f32 %v272, %v274
        %v276 = vadd.f32 %v275, -0.16666654
        %v277 = vmul.f32 %v272, %v276
        %v278 = vadd.f32 %v277, 1.0
        %v279 = vmul.f32 %v278, %v263
        %vm280 = vweird.f32 %v136
        %v281 = vand.u32 %v264, 3
        %vm282 = vcmp.lt.s32.totalorder %v281, 2
        %vm283 = vcmp.eq.s32.totalorder %v281, 0
        %v284 = vxor.u32 %v279, 2147483648
        %v285 = vsel %vm283, %v271, %v284
        %vm286 = vcmp.eq.s32.totalorder %v281, 2
        %v287 = vxor.u32 %v271, 2147483648
        %v288 = vsel %vm286, %v287, %v279
        %v289 = vsel %vm282, %v285, %v288
        %v290 = vsel %vm280, nan, %v289
        %v291 = vmul.f32 %v290, 2.0
        %v292 = vand.u32 2147483647, %v136
        %vm293 = vcmp.le.f32.partialorder %v292, 0.7853982
        %vm294 = vcmp.lt.s32.totalorder %v136, 0
        %v295 = vand.u32 %v136, 2139095040
        %v296 = vshrl.u32 %v295, 23
        %v297 = vsub.s32 %v296, 127
        %v298 = vand.u32 2147483647, %v136
        %v299 = vand.u32 %v298, 8388607
        %v300 = vor.u32 %v299, 8388608
        %v301 = vsub.s32 0, %v300
        %v302 = vadd.s32 %v297, 1
        %vm303 = vcmp.gt.s32.totalorder %v302, 0
        %v304 = vsel %vm303, %v302, 0
        %v305 = vshrl.u32 %v304, 5
        %v306 = vand.u32 %v304, 31
        %v307 = vsub.s32 32, %v306
        %v308 = vshrl.u32 683565275, %v307
        %v309 = vshll.u32 683565275, %v306
        %v310 = vshrl.u32 2475754826, %v307
        %v311 = vor.u32 %v309, %v310
        %v312 = vshll.u32 2475754826, %v306
        %v313 = vshrl.u32 2131351028, %v307
        %v314 = vor.u32 %v312, %v313
        %v315 = vshll.u32 2131351028, %v306
        %v316 = vshrl.u32 2102212464, %v307
        %v317 = vor.u32 %v315, %v316
        %v318 = vshll.u32 2102212464, %v306
        %v319 = vshrl.u32 920167782, %v307
        %v320 = vor.u32 %v318, %v319
        %v321 = vshll.u32 920167782, %v306
        %v322 = vshrl.u32 1326507024, %v307
        %v323 = vor.u32 %v321, %v322
        %vm324 = vcmp.lt.s32.totalorder %v305, 1
        %vm325 = vcmp.lt.s32.totalorder %v305, 2
        %vm326 = vcmp.lt.s32.totalorder %v305, 3
        %vm327 = vcmp.lt.s32.totalorder %v305, 4
        %v328 = vsel %vm324, %v308, %v311
        %v329 = vsel %vm327, %v317, 2102212464
        %v330 = vsel %vm326, %v314, %v329
        %v331 = vsel %vm325, %v328, %v330
        %v332 = vsel %vm324, %v311, %v314
        %v333 = vsel %vm327, %v320, 920167782
        %v334 = vsel %vm326, %v317, %v333
        %v335 = vsel %vm325, %v332, %v334
        %v336 = vsel %vm324, %v314, %v317
        %v337 = vsel %vm327, %v323, 1326507024
        %v338 = vsel %vm326, %v320, %v337
        %v339 = vsel %vm325, %v336, %v338
        %v340 = vshll.u32 %v300, 8
        %v341 = vand.u32 %v340, 65535
        %v342 = vshrl.u32 %v340, 16
        %v343 = vand.u32 %v339, 65535
        %v344 = vshrl.u32 %v339, 16
        %v345 = vmul.u32 %v341, %v343
        %v346 = vmul.u32 %v341, %v344
        %v347 = vmul.u32 %v342, %v343
        %v348 = vmul.u32 %v342, %v344
        %v349 = vshll.u32 %v346, 16
        %v350 = vshrl.u32 %v346, 16
        %v351 = vshll.u32 %v347, 16
        %v352 = vshrl.u32 %v347, 16
        %vm353 = vc.u32 %v345, %v349
        %v354 = vsel %vm353, 1, 0
        %v355 = vadd.s32 %v345, %v349
        %v356 = vadd.s32 %v348, %v354
        %vm357 = vc.u32 %v355, %v351
        %v358 = vsel %vm357, 1, 0
        %v359 = vadd.s32 %v355, %v351
        %v360 = vadd.s32 %v356, %v358
        %v361 = vadd.s32 %v360, %v350
        %v362 = vadd.s32 %v361, %v352
        %v363 = vand.u32 %v340, 65535
        %v364 = vshrl.u32 %v340, 16
        %v365 = vand.u32 %v335, 65535
        %v366 = vshrl.u32 %v335, 16
        %v367 = vmul.u32 %v363, %v365
        %v368 = vmul.u32 %v363, %v366
        %v369 = vmul.u32 %v364, %v365
        %v370 = vmul.u32 %v364, %v366
        %v371 = vshll.u32 %v368, 16
        %v372 = vshrl.u32 %v368, 16
        %v373 = vshll.u32 %v369, 16
        %v374 = vshrl.u32 %v369, 16
        %vm375 = vc.u32 %v367, %v371
        %v376 = vsel %vm375, 1, 0
        %v377 = vadd.s32 %v367, %v371
        %v378 = vadd.s32 %v370, %v376
        %vm379 = vc.u32 %v377, %v373
        %v380 = vsel %vm379, 1, 0
        %v381 = vadd.s32 %v377, %v373
        %v382 = vadd.s32 %v378, %v380
        %v383 = vadd.s32 %v382, %v372
        %v384 = vadd.s32 %v383, %v374
        %v385 = vmul.u32 %v340, %v331
        %v386 = vadd.s32 %v362, %v381
        %vm387 = vc.u32 %v362, %v381
        %v388 = vadd.s32 %v384, 1
        %v389 = vsel %vm387, %v388, %v384
        %v390 = vadd.s32 %v385, %v389
        %v391 = vadd.s32 %v390, 536870912
        %v392 = vshrl.u32 %v391, 30
        %v393 = vshll.u32 %v392, 30
        %v394 = vsub.s32 %v390, %v393
        %vm395 = vcmp.lt.s32.totalorder %v394, 0
        %v396 = vsub.s32 0, %v394
        %v397 = vsel %vm395, %v396, %v394
        %v398 = vclz %v397
        %v399 = vsub.s32 %v398, 2
        %vm400 = vcmp.gt.s32.totalorder 0, %v399
        %v401 = vsel %vm400, 0, %v399
        %v402 = vsub.s32 32, %v401
        %v403 = vshll.u32 %v394, %v401
        %v404 = vshrl.u32 %v386, %v402
        %v405 = vor.u32 %v403, %v404
        %v406 = vsub.s32 4294967266, %v401
        %v407 = vadd.s32 %v406, 127
        %v408 = vshll.u32 %v407, 23
        %v409 = vor.u32 4788187, %v408
        %v410 = vand.u32 2147483647, %v409
        %v412 = vcvt.s32.f32 %v405
        %v413 = vmul.f32 %v412, %v410
        %v414 = vxor.u32 %v413, 2147483648
        %v415 = vsel %vm294, %v414, %v413
        %v416 = vsub.s32 4, %v392
        %v417 = vsel %vm294, %v416, %v392
        %v418 = vsel %vm293, %v136, %v415
        %v419 = vsel %vm293, 0, %v417
        %v420 = vmul.f32 %v418, %v418
        %v421 = vmul.f32 %v420, -0.001358992
        %v422 = vadd.f32 %v421, 0.041655596
        %v423 = vmul.f32 %v420, %v422
        %v424 = vadd.f32 %v423, -0.4999988
        %v425 = vmul.f32 %v420, %v424
        %v426 = vadd.f32 1.0, %v425
        %v427 = vmul.f32 %v418, %v418
        %v428 = vmul.f32 %v427, -0.00019511016
        %v429 = vadd.f32 %v428, 0.008332121
        %v430 = vmul.f32 %v427, %v429
        %v431 = vadd.f32 %v430, -0.16666654
        %v432 = vmul.f32 %v427, %v431
        %v433 = vadd.f32 %v432, 1.0
        %v434 = vmul.f32 %v433, %v418
        %vm435 = vweird.f32 %v136
        %v436 = vadd.s32 %v419, 3
        %v437 = vand.u32 %v436, 3
        %vm438 = vcmp.lt.s32.totalorder %v437, 2
        %vm439 = vcmp.eq.s32.totalorder %v437, 0
        %v440 = vxor.u32 %v434, 2147483648
        %v441 = vsel %vm439, %v426, %v440
        %vm442 = vcmp.eq.s32.totalorder %v437, 2
        %v443 = vxor.u32 %v426, 2147483648
        %v444 = vsel %vm442, %v443, %v434
        %v445 = vsel %vm438, %v441, %v444
        %v446 = vsel %vm435, nan, %v445
        %v447 = vmul.f32 %v135, %v446
        %v448 = vmul.f32 %v291, %v447
        %v449 = vmul.f32 %v291, %v448
        %v450 = vsub.f32 %v449, %v447
        %v451 = vmul.f32 %v291, %v450
        %v452 = vsub.f32 %v451, %v448
        %v453 = vmul.f32 %v291, %v452
        %v454 = vsub.f32 %v453, %v450
        %v455 = vmul.f32 %v291, %v454
        %v456 = vsub.f32 %v455, %v452
        %v457 = vmul.f32 %v291, %v456
        %v458 = vsub.f32 %v457, %v454
        %v459 = vmul.f32 %v291, %v458
        %v460 = vsub.f32 %v459, %v456
        %v462 = vperm.slane %v448, 0
        %v465 = vperm.slane %v450, 0
        %v468 = vperm.slane %v452, 0
        %v471 = vperm.slane %v454, 0
        %v474 = vperm.slane %v456, 0
        %v477 = vperm.slane %v458, 0
        %v480 = vperm.slane %v460, 0
        %vm482 = vcmask 1040384
        %v483 = vsel %vm482, %v447, %v462
        %vm484 = vcmask 1041408
        %v485 = vsel %vm484, %v483, %v465
        %vm486 = vcmask 1042432
        %v487 = vsel %vm486, %v485, %v468
        %vm488 = vcmask 1043456
        %v489 = vsel %vm488, %v487, %v471
        %vm490 = vcmask 1044480
        %v491 = vsel %vm490, %v489, %v474
        %vm492 = vcmask 1045504
        %v493 = vsel %vm492, %v491, %v477
        %vm494 = vcmask 1046528
        %v495 = vsel %vm494, %v493, %v480
        %496 = vst [vmem:[%s129] sm:$0xff] %v495
        %s497 = sand.u32 %s52, 1
        %s498 = scalar_lea.sflag [#allocation4], %s497
        %s499 = sand.u32 %s52, 1
        %s500 = smul.addr %s499, 8
        %s501 = scalar_lea.vmem [#allocation5], %s500
        // Predicated region
        $region29: #{tpu_custom_call.1} parent=23 // pred_check
          %p502 = pneg %p62
        $region30: #{tpu_custom_call.1} parent=23 // pred_check_branch
          %504 = sbr.rel (%p502) target = $region32
        $region31: #{tpu_custom_call.1} parent=23 // pred_region
          %506 = vsyncadd %s498, 0
          %s507 = smul.addr %s18, 8
          %s508 = scalar_lea.hbm %s1, %s507
          %s510 = sshll.u32 %s501, 4
          %s511 = int_to_ptr.vmem [resolvable:$true] %s510
          %s512 = sshll.u32 %s508, 4
          %s513 = int_to_ptr.hbm [resolvable:$true] %s512
          %515 = dma.vmem_to_hbm [thread:$0]  %s511, 128, %s513, %s498
        $region32: #{tpu_custom_call.1} parent=23 // pred_fallthru
          _
      $region24: #{tpu_custom_call.1} parent=5 // pred_fallthru
        _
      %p516 = scmp.le.s32.totalorder 2, %s13
      // Predicated region
      $region33: #{tpu_custom_call.1} parent=5 // pred_check
        %p517 = pneg %p516
      $region34: #{tpu_custom_call.1} parent=5 // pred_check_branch
        %519 = sbr.rel (%p517) target = $region36
      $region35: #{tpu_custom_call.1} parent=5 // pred_region
        %s520 = ssub.s32 %s13, 2
        // Predicated region
        $region37: #{tpu_custom_call.1} parent=35 // pred_check
          %p521 = pneg %p68
        $region38: #{tpu_custom_call.1} parent=35 // pred_check_branch
          %523 = sbr.rel (%p521) target = $region40
        $region39: #{tpu_custom_call.1} parent=35 // pred_region
          %s524 = sand.u32 %s53, 1
          %s525 = scalar_lea.sflag [#allocation4], %s524
          %s526 = sand.u32 %s53, 1
          %s527 = smul.addr %s526, 8
          %s528 = scalar_lea.vmem [#allocation5], %s527
          %530 = dma.done %s525, 128
        $region40: #{tpu_custom_call.1} parent=35 // pred_fallthru
          _
      $region36: #{tpu_custom_call.1} parent=5 // pred_fallthru
        _
    $region6: #{tpu_custom_call.1} parent=1 // loop_footer
      %s17 = sadd.s32 1, %s13
    $region7: #{tpu_custom_call.1} parent=1 // loop_footer_branch
      %12 = sbr.rel target = $region3
    $region8: #{tpu_custom_call.1} parent=1 // loop_exit
      _
    %531 = vsyncpa [#allocation3], 1
    %s532 = scalar_lea.sflag [#allocation3], 1
    %533 = vsyncpa %s532, 1
    %534 = vsyncpa [#allocation4], 1
    %s535 = scalar_lea.sflag [#allocation4], 1
    %536 = vsyncpa %s535, 1

</llo_original>
